<compile_context>
chip_gen: v7x
topology: tpu7x:2x2x1
jax: 0.10.0
libtpu: 0.0.40
codegen_flags: <defaults>
</compile_context>

<pallas_src>
import functools

import jax
import jax.numpy as jnp
from jax.experimental import pallas as pl
from jax.experimental.pallas import tpu as pltpu


# ----------------------------------------------------------------------------
# Pallas kernel 1: parity-decomposed transposed conv as a single matmul
#                  (+ bias, + per-tile InstanceNorm partial statistics)
# ----------------------------------------------------------------------------
def _conv_kernel(x_ref, w_ref, b_ref, y_ref, stats_ref=None):
    # x_ref:     (8*Cin, tS)     bf16  shift-stacked input tile (lane = spatial)
    # w_ref:     (8*Cout, 8*Cin) bf16  parity/shift weight matrix
    # b_ref:     (8*Cout, 1)     f32   bias (tiled over the 8 parity classes)
    # y_ref:     (8*Cout, tS)    f32   raw conv output tile (lane-dense)
    # stats_ref: (8*Cout, 2)     f32   [sum, sum_sq] over this tile (ADN only)
    acc = jnp.dot(w_ref[...], x_ref[...], preferred_element_type=jnp.float32)
    acc = acc + b_ref[...]
    y_ref[...] = acc
    if stats_ref is not None:
        s1 = jnp.sum(acc, axis=1, keepdims=True)
        s2 = jnp.sum(acc * acc, axis=1, keepdims=True)
        stats_ref[...] = jnp.concatenate([s1, s2], axis=1)


# ----------------------------------------------------------------------------
# Pallas kernel 2: fused InstanceNorm (scale/shift) + PReLU, elementwise
# ----------------------------------------------------------------------------
def _adn_kernel(alpha, y_ref, scale_ref, shift_ref, o_ref):
    # y_ref: (8*Cout, tS) f32 ; scale/shift: (8*Cout, 1) f32 per sample
    v = y_ref[...] * scale_ref[...] + shift_ref[...]
    o_ref[...] = jnp.where(v >= 0.0, v, alpha * v)


# ----------------------------------------------------------------------------
# Wrapper glue (layout only; all compute is in the kernels)
# ----------------------------------------------------------------------------
# Per-axis tap index k of the ConvTranspose kernel used by output parity p and
# input shift s:   out[2m+p] += x[m+s] * w[k]   (k=3, stride=2, pad=1, op=1)
_PARITY_TAP = {(0, 0): 1, (1, 0): 2, (1, 1): 0}


def _choose_tile(S, max_tile=1024):
    if S <= max_tile:
        return S
    t = max_tile
    while t >= 128:
        if S % t == 0:
            return t
        t //= 2
    return S  # fallback: no spatial tiling


def _build_weight_matrix(w_t):
    """ConvTranspose3d weight (Cin, Cout, 3,3,3) -> (8*Cout, 8*Cin) matrix."""
    Cin, Cout = w_t.shape[0], w_t.shape[1]
    rows = []
    for pd in (0, 1):
        for ph in (0, 1):
            for pw in (0, 1):
                row = []
                for sd in (0, 1):
                    for sh in (0, 1):
                        for sw in (0, 1):
                            kd = _PARITY_TAP.get((pd, sd))
                            kh = _PARITY_TAP.get((ph, sh))
                            kw = _PARITY_TAP.get((pw, sw))
                            if kd is None or kh is None or kw is None:
                                row.append(jnp.zeros((Cout, Cin), jnp.float32))
                            else:
                                row.append(
                                    w_t[:, :, kd, kh, kw].T.astype(jnp.float32))
                rows.append(row)
    return jnp.block(rows)  # (8*Cout, 8*Cin)


def _build_shift_views(x):
    """x: (N, C, D, H, W) -> (N, 8*C, D*H*W): the 8 {0,1}-shift views stacked."""
    N, C, D, H, W = x.shape
    xp = jnp.pad(x, ((0, 0), (0, 0), (0, 1), (0, 1), (0, 1)))
    views = []
    for sd in (0, 1):
        for sh in (0, 1):
            for sw in (0, 1):
                views.append(xp[:, :, sd:sd + D, sh:sh + H, sw:sw + W])
    return jnp.concatenate(views, axis=1).reshape(N, 8 * C, D * H * W)


def decoder_block(x_ncdhw, w_t, bias, *, adn, alpha=0.2, eps=1e-5):
    """ConvTranspose3d(k=3,s=2,p=1,op=1) [+ InstanceNorm + PReLU] via Pallas."""
    N, Cin, D, H, W = x_ncdhw.shape
    Cout = w_t.shape[1]
    S = D * H * W
    CI, CO = 8 * Cin, 8 * Cout
    tS = _choose_tile(S)
    nS = S // tS

    x_big = _build_shift_views(x_ncdhw.astype(jnp.bfloat16))       # (N, CI, S)
    w_all = _build_weight_matrix(w_t).astype(jnp.bfloat16)         # (CO, CI)
    b_all = jnp.tile(bias.astype(jnp.float32), 8).reshape(CO, 1)   # (CO, 1)

    in_specs = [
        pl.BlockSpec((None, CI, tS), lambda n, s: (n, 0, s)),
        pl.BlockSpec((CO, CI), lambda n, s: (0, 0)),
        pl.BlockSpec((CO, 1), lambda n, s: (0, 0)),
    ]
    y_spec = pl.BlockSpec((None, CO, tS), lambda n, s: (n, 0, s))

    if adn:
        out_shape = (jax.ShapeDtypeStruct((N, CO, S), jnp.float32),
                     jax.ShapeDtypeStruct((N, nS, CO, 2), jnp.float32))
        out_specs = (y_spec,
                     pl.BlockSpec((None, None, CO, 2), lambda n, s: (n, s, 0, 0)))
    else:
        out_shape = jax.ShapeDtypeStruct((N, CO, S), jnp.float32)
        out_specs = y_spec

    res = pl.pallas_call(
        _conv_kernel,
        out_shape=out_shape,
        grid=(N, nS),
        in_specs=in_specs,
        out_specs=out_specs,
        compiler_params=pltpu.CompilerParams(
            dimension_semantics=("parallel", "parallel")),
    )(x_big, w_all, b_all)

    if adn:
        y_raw, stats = res
        # Exact per-(sample, channel) InstanceNorm stats across all spatial
        # tiles and all 8 parity classes (total voxel count = 8*S).
        tot = stats.sum(axis=1)                        # (N, CO, 2)
        tot = tot.reshape(N, 8, Cout, 2).sum(axis=1)   # (N, Cout, 2)
        cnt = float(8 * S)
        mean = tot[..., 0] / cnt
        var = jnp.maximum(tot[..., 1] / cnt - mean * mean, 0.0)
        scale = jax.lax.rsqrt(var + eps)               # (N, Cout)
        shift = -mean * scale
        scale_b = jnp.tile(scale, (1, 8)).reshape(N, CO, 1)
        shift_b = jnp.tile(shift, (1, 8)).reshape(N, CO, 1)

        # Dropout(0.1): identity in eval mode; PReLU(alpha=0.2).
        y_out = pl.pallas_call(
            functools.partial(_adn_kernel, alpha),
            out_shape=jax.ShapeDtypeStruct((N, CO, S), jnp.float32),
            grid=(N, nS),
            in_specs=[
                pl.BlockSpec((None, CO, tS), lambda n, s: (n, 0, s)),
                pl.BlockSpec((None, CO, 1), lambda n, s: (n, 0, 0)),
                pl.BlockSpec((None, CO, 1), lambda n, s: (n, 0, 0)),
            ],
            out_specs=pl.BlockSpec((None, CO, tS), lambda n, s: (n, 0, s)),
            compiler_params=pltpu.CompilerParams(
                dimension_semantics=("parallel", "parallel")),
        )(y_raw, scale_b, shift_b)
    else:
        y_out = res

    # Interleave the 8 parity classes into the full-resolution NCDHW output.
    y = y_out.reshape(N, 2, 2, 2, Cout, D, H, W)        # (N, pd, ph, pw, C, D, H, W)
    y = jnp.transpose(y, (0, 4, 5, 1, 6, 2, 7, 3))      # (N, C, D, pd, H, ph, W, pw)
    return y.reshape(N, Cout, 2 * D, 2 * H, 2 * W)


# ----------------------------------------------------------------------------
# Decoder3D config + forward (mirrors Decoder3D.build_decoder / forward)
# ----------------------------------------------------------------------------
def decoder_config(depth, in_channels, out_channels, skip_sizes):
    cfgs = []
    in_c = in_channels
    out_c = skip_sizes[0] // 2
    for i in range(depth - 2):
        cin = in_c + skip_sizes[i]
        cfgs.append(dict(cin=cin, cout=out_c, adn=True))
        in_c = out_c
        if out_c != out_channels:
            out_c //= 2
    cfgs.append(dict(cin=in_c + skip_sizes[-1], cout=out_channels, adn=False))
    return cfgs


def decoder3d_forward(out, skips, params, cfgs):
    # forward(x): out, skip = x ; concat along channels, apply block, repeat.
    for cfg, p, skip in zip(cfgs, params, skips):
        out = jnp.concatenate([out, skip], axis=1)
        out = decoder_block(out, p["w"], p["b"], adn=cfg["adn"], alpha=0.2)
    return out


# ----------------------------------------------------------------------------
# Pure-JAX f32 reference (lax conv with lhs_dilation) for correctness check
# ----------------------------------------------------------------------------
def _ref_block(x, w_t, b, adn, alpha=0.2, eps=1e-5):
    w = jnp.transpose(w_t, (1, 0, 2, 3, 4))[:, :, ::-1, ::-1, ::-1]  # OIDHW flip
    y = jax.lax.conv_general_dilated(
        x, w,
        window_strides=(1, 1, 1),
        padding=[(1, 2), (1, 2), (1, 2)],
        lhs_dilation=(2, 2, 2),
        dimension_numbers=("NCDHW", "OIDHW", "NCDHW"),
        precision=jax.lax.Precision.HIGHEST,
    )
    y = y + b[None, :, None, None, None]
    if adn:
        mean = jnp.mean(y, axis=(2, 3, 4), keepdims=True)
        var = jnp.mean(jnp.square(y - mean), axis=(2, 3, 4), keepdims=True)
        y = (y - mean) * jax.lax.rsqrt(var + eps)
        y = jnp.where(y >= 0, y, alpha * y)
    return y


def _ref_forward(out, skips, params, cfgs):
    for cfg, p, skip in zip(cfgs, params, skips):
        out = jnp.concatenate([out, skip], axis=1)
        out = _ref_block(out, p["w"], p["b"], cfg["adn"])
    return out


# ----------------------------------------------------------------------------
# Main
# ----------------------------------------------------------------------------
if __name__ == "__main__":
    key = jax.random.PRNGKey(0)

    # Small Decoder3D instance: depth=4, in_channels=16, out_channels=4,
    # skip_sizes=(16, 8, 8).  Bottleneck spatial size 2^3; output 16^3.
    depth, in_channels, out_channels = 4, 16, 4
    skip_sizes = (16, 8, 8)
    N, base_spatial = 2, 2

    cfgs = decoder_config(depth, in_channels, out_channels, skip_sizes)

    # Deterministic parameter init (ConvTranspose3d weight layout: Cin,Cout,3,3,3).
    params = []
    for cfg in cfgs:
        key, kw_, kb_ = jax.random.split(key, 3)
        fan = cfg["cin"] * 27
        w = jax.random.normal(kw_, (cfg["cin"], cfg["cout"], 3, 3, 3),
                              jnp.float32) / jnp.sqrt(float(fan))
        b = 0.01 * jax.random.normal(kb_, (cfg["cout"],), jnp.float32)
        params.append(dict(w=w, b=b))

    # Inputs: x = (out, skips), NCDHW.
    key, ko = jax.random.split(key)
    out0 = jax.random.normal(ko, (N, in_channels,
                                  base_spatial, base_spatial, base_spatial),
                             jnp.float32)
    skips = []
    sp = base_spatial
    for i, ch in enumerate(skip_sizes):
        key, ks = jax.random.split(key)
        skips.append(jax.random.normal(ks, (N, ch, sp, sp, sp), jnp.float32))
        sp *= 2

    # Run Pallas implementation.
    y = decoder3d_forward(out0, skips, params, cfgs)
    y = jax.block_until_ready(y)

    # Correctness check against the pure-f32 JAX reference.  The kernel feeds
    # bf16 activations/weights to the MXU (f32 accumulation / norm math), so a
    # slightly wider absolute tolerance than pure-f32 is used.
    y_ref = jax.block_until_ready(_ref_forward(out0, skips, params, cfgs))
    assert y.shape == (N, out_channels, 16, 16, 16), y.shape
    max_err = float(jnp.max(jnp.abs(y - y_ref)))
    assert max_err < 5e-2, f"mismatch vs reference: max abs err {max_err}"

    print("KERNEL_OK")
</pallas_src>

<mosaic_0001>
module attributes {stable_mosaic.version = 11 : i64} {
  func.func @_conv_kernel(%arg0: i32, %arg1: i32, %arg2: memref<1x256x8xbf16, #tpu.memory_space<vmem>>, %arg3: memref<64x256xbf16, #tpu.memory_space<vmem>>, %arg4: memref<64x1xf32, #tpu.memory_space<vmem>>, %arg5: memref<1x64x8xf32, #tpu.memory_space<vmem>>, %arg6: memref<1x1x64x2xf32, #tpu.memory_space<vmem>>) attributes {dimension_semantics = [#tpu.dimension_semantics<parallel>, #tpu.dimension_semantics<parallel>], iteration_bounds = array<i64: 2, 1>, scalar_prefetch = 0 : i64, scratch_operands = 0 : i64, tpu.core_type = #tpu.core_type<tc>, window_params = [{transform_indices = @transform_0, window_bounds = array<i64: 1, 256, 8>}, {pipeline_mode = #tpu.pipeline_mode<synchronous>, transform_indices = @transform_1, window_bounds = array<i64: 64, 256>}, {pipeline_mode = #tpu.pipeline_mode<synchronous>, transform_indices = @transform_2, window_bounds = array<i64: 64, 1>}, {transform_indices = @transform_3, window_bounds = array<i64: 1, 64, 8>}, {transform_indices = @transform_4, window_bounds = array<i64: 1, 1, 64, 2>}]} {
    %c0 = arith.constant 0 : index
    %c0_0 = arith.constant 0 : index
    %0 = vector.load %arg3[%c0, %c0_0] : memref<64x256xbf16, #tpu.memory_space<vmem>>, vector<64x256xbf16>
    %c0_1 = arith.constant 0 : index
    %c0_2 = arith.constant 0 : index
    %c0_3 = arith.constant 0 : index
    %1 = vector.load %arg2[%c0_1, %c0_2, %c0_3] : memref<1x256x8xbf16, #tpu.memory_space<vmem>>, vector<1x256x8xbf16>
    %2 = vector.shape_cast %1 : vector<1x256x8xbf16> to vector<256x8xbf16>
    %cst = arith.constant dense<0.000000e+00> : vector<64x8xf32>
    %3 = tpu.matmul %0, %2, %cst {dimension_numbers = #tpu.dot_dimension_numbers<[1], [0], [0], [1], [0, 0, 1, 1], [], []>} : vector<64x256xbf16>, vector<256x8xbf16>, vector<64x8xf32> -> vector<64x8xf32>
    %c0_4 = arith.constant 0 : index
    %c0_5 = arith.constant 0 : index
    %4 = vector.load %arg4[%c0_4, %c0_5] : memref<64x1xf32, #tpu.memory_space<vmem>>, vector<64x1xf32>
    %5 = vector.broadcast %4 : vector<64x1xf32> to vector<64x8xf32>
    %6 = arith.addf %3, %5 : vector<64x8xf32>
    %c0_6 = arith.constant 0 : index
    %c0_7 = arith.constant 0 : index
    %c0_8 = arith.constant 0 : index
    %7 = vector.load %arg5[%c0_6, %c0_7, %c0_8] : memref<1x64x8xf32, #tpu.memory_space<vmem>>, vector<1x64x8xf32>
    %8 = vector.shape_cast %7 : vector<1x64x8xf32> to vector<64x8xf32>
    %9 = vector.shape_cast %6 : vector<64x8xf32> to vector<1x64x8xf32>
    tpu.vector_store %arg5[%c0_6, %c0_7, %c0_8], %9 {strides = array<i32>} : memref<1x64x8xf32, #tpu.memory_space<vmem>>, vector<1x64x8xf32>,
    %cst_9 = arith.constant dense<0.000000e+00> : vector<64xf32>
    %10 = vector.multi_reduction <add>, %6, %cst_9 [1] : vector<64x8xf32> to vector<64xf32>
    %11 = vector.shape_cast %10 : vector<64xf32> to vector<64x1xf32>
    %12 = arith.mulf %6, %6 : vector<64x8xf32>
    %cst_10 = arith.constant dense<0.000000e+00> : vector<64xf32>
    %13 = vector.multi_reduction <add>, %12, %cst_10 [1] : vector<64x8xf32> to vector<64xf32>
    %14 = vector.shape_cast %13 : vector<64xf32> to vector<64x1xf32>
    %15 = tpu.concatenate %11, %14 in 1 : vector<64x1xf32>, vector<64x1xf32> -> vector<64x2xf32>
    %c0_11 = arith.constant 0 : index
    %c0_12 = arith.constant 0 : index
    %c0_13 = arith.constant 0 : index
    %c0_14 = arith.constant 0 : index
    %16 = vector.load %arg6[%c0_11, %c0_12, %c0_13, %c0_14] : memref<1x1x64x2xf32, #tpu.memory_space<vmem>>, vector<1x1x64x2xf32>
    %17 = vector.shape_cast %16 : vector<1x1x64x2xf32> to vector<64x2xf32>
    %18 = vector.shape_cast %15 : vector<64x2xf32> to vector<1x1x64x2xf32>
    tpu.vector_store %arg6[%c0_11, %c0_12, %c0_13, %c0_14], %18 {strides = array<i32>} : memref<1x1x64x2xf32, #tpu.memory_space<vmem>>, vector<1x1x64x2xf32>,
    return
  }
  func.func @transform_0(%arg0: i32, %arg1: i32) -> (i32, i32, i32) {
    %c0_i32 = arith.constant 0 : i32
    %c0_i32_0 = arith.constant 0 : i32
    return %arg0, %c0_i32, %arg1 : i32, i32, i32
  }
  func.func @transform_1(%arg0: i32, %arg1: i32) -> (i32, i32) {
    %c0_i32 = arith.constant 0 : i32
    %c0_i32_0 = arith.constant 0 : i32
    %c0_i32_1 = arith.constant 0 : i32
    return %c0_i32, %c0_i32_0 : i32, i32
  }
  func.func @transform_2(%arg0: i32, %arg1: i32) -> (i32, i32) {
    %c0_i32 = arith.constant 0 : i32
    %c0_i32_0 = arith.constant 0 : i32
    %c0_i32_1 = arith.constant 0 : i32
    return %c0_i32, %c0_i32_0 : i32, i32
  }
  func.func @transform_3(%arg0: i32, %arg1: i32) -> (i32, i32, i32) {
    %c0_i32 = arith.constant 0 : i32
    %c0_i32_0 = arith.constant 0 : i32
    return %arg0, %c0_i32, %arg1 : i32, i32, i32
  }
  func.func @transform_4(%arg0: i32, %arg1: i32) -> (i32, i32, i32, i32) {
    %c0_i32 = arith.constant 0 : i32
    %c0_i32_0 = arith.constant 0 : i32
    %c0_i32_1 = arith.constant 0 : i32
    return %arg0, %arg1, %c0_i32, %c0_i32_0 : i32, i32, i32, i32
  }
}

</mosaic_0001>

<llo_original>
// kernel: tpu_custom_call.1
$region0: #{tpu_custom_call.1}
  #allocation0 [shape = 'u32[]', space=smem, size = 0x4, offset = 0x4, fixed_abs, tag = 'smem constant byte address 0x4 - core index']
  #allocation1 [shape = 'u32[144,128]{1,0:T(1,128)}', space=vmem, size = 0x12000, scoped, tag = 'internal scratch']
  %s0 = inlined_call_operand.vmem [shape: bf16[2,256,8], index: 0, kind: input, shape index: {}]
  %s1 = inlined_call_operand.vmem [shape: bf16[64,256], index: 1, kind: input, shape index: {}]
  %s2 = inlined_call_operand.vmem [shape: f32[64,1], index: 2, kind: input, shape index: {}]
  %s3 = inlined_call_operand.vmem [shape: f32[2,64,8], index: 3, kind: output, shape index: {0}]
  %s4 = inlined_call_operand.vmem [shape: f32[2,1,64,2], index: 4, kind: output, shape index: {1}]
  %5 = xla_tuple %s3, %s4
  %s6 = sld [smem:[#allocation0]]
  $region53: #{tpu_custom_call.1} parent=0
    _
  %s8 = ssub.s32 1, %s6
  %s9 = scalar_select 0, %s8, %s6
  loop: start=0, step=1, limit=4
  $region2: #{tpu_custom_call.1} parent=0 // loop_pre_header
    _
  $region3: #{tpu_custom_call.1} parent=0 // loop_header
    %s11 = sphi 0, %s15
    %p12 = scmp.ge.s32.totalorder %s11, 4
    %s18 = sphi 0, %s30
    %s19 = sphi 0, %s26
    %s20 = sphi 0, %s18
    %s21 = sphi 0, %s19
    %s22 = sphi 0, %s20
    %s23 = sphi 0, %s21
    %s35 = sphi 0, %s37
    %s38 = sphi 0, %s35
    %s39 = sphi 0, %s38
    %s55 = sphi 0, %s39
    %s59 = sphi 0, %s59
    %s61 = sphi 0, %s59
    %s62 = sphi 0, %s61
    %s76 = sphi 0, %s62
    %s80 = sphi 0, %s80
    %s82 = sphi 0, %s80
    %s83 = sphi 0, %s82
    %s97 = sphi 0, %s83
    %s105 = sphi 0, %s107
    %s108 = sphi 0, %s105
    %s109 = sphi 0, %s108
    %s125 = sphi 0, %s109
    %s133 = sphi 0, %s135
    %s136 = sphi 0, %s133
    %s137 = sphi 0, %s136
    %s153 = sphi 0, %s137
  $region4: #{tpu_custom_call.1} parent=0 // loop_header_branch
    %14 = sbr.rel (%p12) target = $region8
  $region5: #{tpu_custom_call.1} parent=0 // loop_body
    %s16 = ssub.s32 %s11, 1
    %s17 = ssub.s32 %s11, 2
    %s24 = sadd.s32 1, %s19
    %p25 = scmp.ge.s32.totalorder %s24, 1
    %s26 = scalar_select %p25, 0, %s24
    %s27 = sadd.s32 1, %s18
    %s28 = scalar_select %p25, %s27, %s18
    %p29 = scmp.ge.s32.totalorder %s28, 2
    %s30 = scalar_select %p29, 0, %s28
    %s31 = ssub.s32 %s18, %s30
    %s32 = ssub.s32 %s19, %s26
    %s33 = sor.u32 %s31, %s32
    %p34 = scmp.eq.s32.totalorder %s33, 0
    %s36 = sadd.s32 %s35, 1
    %s37 = scalar_select %p34, %s35, %s36
    %p40 = pneg %p34
    %p41 = scmp.eq.s32.totalorder %s11, 1
    %p42 = por %p40, %p41
    %p43 = scmp.ne.s32.totalorder %s35, %s38
    %p44 = scmp.eq.s32.totalorder %s11, 0
    %p45 = por %p43, %p44
    %p46 = scmp.ne.s32.totalorder %s35, %s38
    %p47 = scmp.eq.s32.totalorder %s16, 1
    %p48 = por %p46, %p47
    %p49 = scmp.ne.s32.totalorder %s38, %s39
    %p50 = scmp.eq.s32.totalorder %s16, 0
    %p51 = por %p49, %p50
    %p52 = scmp.ne.s32.totalorder %s38, %s39
    %p53 = scmp.eq.s32.totalorder %s17, 1
    %p54 = por %p52, %p53
    %p56 = scmp.ne.s32.totalorder %s39, %s55
    %p57 = scmp.eq.s32.totalorder %s17, 0
    %p58 = por %p56, %p57
    %s60 = sadd.s32 %s59, 1
    %p63 = scmp.eq.s32.totalorder %s11, 1
    %p64 = scmp.ne.s32.totalorder %s59, %s61
    %p65 = scmp.eq.s32.totalorder %s11, 0
    %p66 = por %p64, %p65
    %p67 = scmp.ne.s32.totalorder %s59, %s61
    %p68 = scmp.eq.s32.totalorder %s16, 1
    %p69 = por %p67, %p68
    %p70 = scmp.ne.s32.totalorder %s61, %s62
    %p71 = scmp.eq.s32.totalorder %s16, 0
    %p72 = por %p70, %p71
    %p73 = scmp.ne.s32.totalorder %s61, %s62
    %p74 = scmp.eq.s32.totalorder %s17, 1
    %p75 = por %p73, %p74
    %p77 = scmp.ne.s32.totalorder %s62, %s76
    %p78 = scmp.eq.s32.totalorder %s17, 0
    %p79 = por %p77, %p78
    %s81 = sadd.s32 %s80, 1
    %p84 = scmp.eq.s32.totalorder %s11, 1
    %p85 = scmp.ne.s32.totalorder %s80, %s82
    %p86 = scmp.eq.s32.totalorder %s11, 0
    %p87 = por %p85, %p86
    %p88 = scmp.ne.s32.totalorder %s80, %s82
    %p89 = scmp.eq.s32.totalorder %s16, 1
    %p90 = por %p88, %p89
    %p91 = scmp.ne.s32.totalorder %s82, %s83
    %p92 = scmp.eq.s32.totalorder %s16, 0
    %p93 = por %p91, %p92
    %p94 = scmp.ne.s32.totalorder %s82, %s83
    %p95 = scmp.eq.s32.totalorder %s17, 1
    %p96 = por %p94, %p95
    %p98 = scmp.ne.s32.totalorder %s83, %s97
    %p99 = scmp.eq.s32.totalorder %s17, 0
    %p100 = por %p98, %p99
    %s101 = ssub.s32 %s18, %s30
    %s102 = ssub.s32 %s19, %s26
    %s103 = sor.u32 %s101, %s102
    %p104 = scmp.eq.s32.totalorder %s103, 0
    %s106 = sadd.s32 %s105, 1
    %s107 = scalar_select %p104, %s105, %s106
    %p110 = pneg %p104
    %p111 = scmp.eq.s32.totalorder %s11, 1
    %p112 = por %p110, %p111
    %p113 = scmp.ne.s32.totalorder %s105, %s108
    %p114 = scmp.eq.s32.totalorder %s11, 0
    %p115 = por %p113, %p114
    %p116 = scmp.ne.s32.totalorder %s105, %s108
    %p117 = scmp.eq.s32.totalorder %s16, 1
    %p118 = por %p116, %p117
    %p119 = scmp.ne.s32.totalorder %s108, %s109
    %p120 = scmp.eq.s32.totalorder %s16, 0
    %p121 = por %p119, %p120
    %p122 = scmp.ne.s32.totalorder %s108, %s109
    %p123 = scmp.eq.s32.totalorder %s17, 1
    %p124 = por %p122, %p123
    %p126 = scmp.ne.s32.totalorder %s109, %s125
    %p127 = scmp.eq.s32.totalorder %s17, 0
    %p128 = por %p126, %p127
    %s129 = ssub.s32 %s18, %s30
    %s130 = ssub.s32 %s19, %s26
    %s131 = sor.u32 %s129, %s130
    %p132 = scmp.eq.s32.totalorder %s131, 0
    %s134 = sadd.s32 %s133, 1
    %s135 = scalar_select %p132, %s133, %s134
    %p138 = pneg %p132
    %p139 = scmp.eq.s32.totalorder %s11, 1
    %p140 = por %p138, %p139
    %p141 = scmp.ne.s32.totalorder %s133, %s136
    %p142 = scmp.eq.s32.totalorder %s11, 0
    %p143 = por %p141, %p142
    %p144 = scmp.ne.s32.totalorder %s133, %s136
    %p145 = scmp.eq.s32.totalorder %s16, 1
    %p146 = por %p144, %p145
    %p147 = scmp.ne.s32.totalorder %s136, %s137
    %p148 = scmp.eq.s32.totalorder %s16, 0
    %p149 = por %p147, %p148
    %p150 = scmp.ne.s32.totalorder %s136, %s137
    %p151 = scmp.eq.s32.totalorder %s17, 1
    %p152 = por %p150, %p151
    %p154 = scmp.ne.s32.totalorder %s137, %s153
    %p155 = scmp.eq.s32.totalorder %s17, 0
    %p156 = por %p154, %p155
    %p157 = scmp.le.s32.totalorder 1, %s11
    %p158 = scmp.lt.s32.totalorder %s11, 3
    %p159 = pnand %p157, %p158
    %p160 = pneg %p159
    // Predicated region
    $region9: #{tpu_custom_call.1} parent=5 // pred_check
      _
    $region10: #{tpu_custom_call.1} parent=5 // pred_check_branch
      %162 = sbr.rel (%p159) target = $region12
    $region11: #{tpu_custom_call.1} parent=5 // pred_region
      %s163 = ssub.s32 %s11, 1
      // Predicated region
      $region13: #{tpu_custom_call.1} parent=11 // pred_check
        %p164 = pneg %p72
      $region14: #{tpu_custom_call.1} parent=11 // pred_check_branch
        %166 = sbr.rel (%p164) target = $region16
      $region15: #{tpu_custom_call.1} parent=11 // pred_region
        _
      $region16: #{tpu_custom_call.1} parent=11 // pred_fallthru
        _
      // Predicated region
      $region17: #{tpu_custom_call.1} parent=11 // pred_check
        %p167 = pneg %p93
      $region18: #{tpu_custom_call.1} parent=11 // pred_check_branch
        %169 = sbr.rel (%p167) target = $region20
      $region19: #{tpu_custom_call.1} parent=11 // pred_region
        _
      $region20: #{tpu_custom_call.1} parent=11 // pred_fallthru
        _
    $region12: #{tpu_custom_call.1} parent=5 // pred_fallthru
      _
    %p170 = scmp.lt.s32.totalorder %s11, 2
    // Predicated region
    $region21: #{tpu_custom_call.1} parent=5 // pred_check
      %p171 = pneg %p170
    $region22: #{tpu_custom_call.1} parent=5 // pred_check_branch
      %173 = sbr.rel (%p171) target = $region24
    $region23: #{tpu_custom_call.1} parent=5 // pred_region
      // Predicated region
      $region25: #{tpu_custom_call.1} parent=23 // pred_check
        %p174 = pneg %p45
      $region26: #{tpu_custom_call.1} parent=23 // pred_check_branch
        %176 = sbr.rel (%p174) target = $region28
      $region27: #{tpu_custom_call.1} parent=23 // pred_region
        %p177 = scmp.lt.s32.totalorder %s18, 1
        %s178 = scalar_select %p177, %s18, 1
        %p179 = scmp.lt.s32.totalorder %s19, 0
        %s180 = scalar_select %p179, %s19, 0
        %s181 = smul.addr %s178, 32
        %s182 = sadd.s32 %s180, %s181
        %s183 = smul.addr %s182, 4
        %s184 = scalar_lea.vmem %s0, %s183
      $region28: #{tpu_custom_call.1} parent=23 // pred_fallthru
        _
    $region24: #{tpu_custom_call.1} parent=5 // pred_fallthru
      _
    %p185 = scmp.le.s32.totalorder 1, %s11
    %p186 = scmp.lt.s32.totalorder %s11, 3
    %p187 = pnand %p185, %p186
    %p188 = pneg %p187
    // Predicated region
    $region29: #{tpu_custom_call.1} parent=5 // pred_check
      _
    $region30: #{tpu_custom_call.1} parent=5 // pred_check_branch
      %190 = sbr.rel (%p187) target = $region32
    $region31: #{tpu_custom_call.1} parent=5 // pred_region
      %s191 = ssub.s32 %s11, 1
      %p192 = scmp.lt.s32.totalorder %s20, 1
      %s193 = scalar_select %p192, %s20, 1
      %p194 = scmp.lt.s32.totalorder %s21, 0
      %s195 = scalar_select %p194, %s21, 0
      %s196 = smul.addr %s193, 32
      %s197 = sadd.s32 %s195, %s196
      %s198 = smul.addr %s197, 4
      %s199 = scalar_lea.vmem %s0, %s198
      %p200 = pneg %p51
      %p201 = pneg %p48
      %p202 = pneg %p72
      %p203 = pneg %p69
      %p204 = pneg %p93
      %p205 = pneg %p90
      %p206 = pneg %p121
      %p207 = pneg %p118
      %p208 = scmp.lt.s32.totalorder %s20, 1
      %s209 = scalar_select %p208, %s20, 1
      %p210 = scmp.lt.s32.totalorder %s21, 0
      %s211 = scalar_select %p210, %s21, 0
      %s212 = smul.addr %s209, 8
      %s213 = sadd.s32 %s211, %s212
      %s214 = smul.addr %s213, 8
      %s215 = scalar_lea.vmem %s3, %s214
      %p216 = pneg %p149
      %p217 = pneg %p146
      %p218 = scmp.lt.s32.totalorder %s20, 1
      %s219 = scalar_select %p218, %s20, 1
      %p220 = scmp.lt.s32.totalorder %s21, 0
      %s221 = scalar_select %p220, %s21, 0
      %s222 = smul.addr %s221, 8
      %s223 = smul.addr %s219, 8
      %s224 = sadd.s32 %s222, %s223
      %s225 = smul.addr %s224, 8
      %s226 = scalar_lea.vmem %s4, %s225
      %p227 = scmp.lt.s32.totalorder %s20, 1
      %s228 = scalar_select %p227, %s20, 1
      %p229 = scmp.lt.s32.totalorder %s21, 0
      %s230 = scalar_select %p229, %s21, 0
      %s231 = smul.addr %s228, 32
      %s232 = sadd.s32 %s230, %s231
      %s233 = smul.addr %s232, 4
      %s234 = scalar_lea.vmem %s0, %s233
      %p235 = scmp.lt.s32.totalorder %s20, 1
      %s236 = scalar_select %p235, %s20, 1
      %p237 = scmp.lt.s32.totalorder %s21, 0
      %s238 = scalar_select %p237, %s21, 0
      %s239 = smul.addr %s236, 8
      %s240 = sadd.s32 %s238, %s239
      %s241 = smul.addr %s240, 8
      %s242 = scalar_lea.vmem %s3, %s241
      %p243 = scmp.lt.s32.totalorder %s20, 1
      %s244 = scalar_select %p243, %s20, 1
      %p245 = scmp.lt.s32.totalorder %s21, 0
      %s246 = scalar_select %p245, %s21, 0
      %s247 = smul.addr %s246, 8
      %s248 = smul.addr %s244, 8
      %s249 = sadd.s32 %s247, %s248
      %s250 = smul.addr %s249, 8
      %s251 = scalar_lea.vmem %s4, %s250
      %v253 = vld [vmem:[%s1] sm:$0xff]
      %v254 = vld [vmem:[%s1 + $0x8] sm:$0xff]
      %v255 = vld [vmem:[%s1 + $0x10] sm:$0xff]
      %v256 = vld [vmem:[%s1 + $0x18] sm:$0xff]
      %v257 = vld [vmem:[%s1 + $0x20] sm:$0xff]
      %v258 = vld [vmem:[%s1 + $0x28] sm:$0xff]
      %v259 = vld [vmem:[%s1 + $0x30] sm:$0xff]
      %v260 = vld [vmem:[%s1 + $0x38] sm:$0xff]
      %v261 = vld [vmem:[%s234] sm:$0xf]
      %v262 = vld [vmem:[%s234 + $0x4] sm:$0xf]
      %v263 = vld [vmem:[%s234 + $0x8] sm:$0xf]
      %v264 = vld [vmem:[%s234 + $0xc] sm:$0xf]
      %v265 = vld [vmem:[%s234 + $0x10] sm:$0xf]
      %v266 = vld [vmem:[%s234 + $0x14] sm:$0xf]
      %v267 = vld [vmem:[%s234 + $0x18] sm:$0xf]
      %v268 = vld [vmem:[%s234 + $0x1c] sm:$0xf]
      %v269 = vld [vmem:[%s234 + $0x20] sm:$0xf]
      %v270 = vld [vmem:[%s234 + $0x24] sm:$0xf]
      %v271 = vld [vmem:[%s234 + $0x28] sm:$0xf]
      %v272 = vld [vmem:[%s234 + $0x2c] sm:$0xf]
      %v273 = vld [vmem:[%s234 + $0x30] sm:$0xf]
      %v274 = vld [vmem:[%s234 + $0x34] sm:$0xf]
      %v275 = vld [vmem:[%s234 + $0x38] sm:$0xf]
      %v276 = vld [vmem:[%s234 + $0x3c] sm:$0xf]
      %v277 = vld [vmem:[%s234 + $0x40] sm:$0xf]
      %v278 = vld [vmem:[%s234 + $0x44] sm:$0xf]
      %v279 = vld [vmem:[%s234 + $0x48] sm:$0xf]
      %v280 = vld [vmem:[%s234 + $0x4c] sm:$0xf]
      %v281 = vld [vmem:[%s234 + $0x50] sm:$0xf]
      %v282 = vld [vmem:[%s234 + $0x54] sm:$0xf]
      %v283 = vld [vmem:[%s234 + $0x58] sm:$0xf]
      %v284 = vld [vmem:[%s234 + $0x5c] sm:$0xf]
      %v285 = vld [vmem:[%s234 + $0x60] sm:$0xf]
      %v286 = vld [vmem:[%s234 + $0x64] sm:$0xf]
      %v287 = vld [vmem:[%s234 + $0x68] sm:$0xf]
      %v288 = vld [vmem:[%s234 + $0x6c] sm:$0xf]
      %v289 = vld [vmem:[%s234 + $0x70] sm:$0xf]
      %v290 = vld [vmem:[%s234 + $0x74] sm:$0xf]
      %v291 = vld [vmem:[%s234 + $0x78] sm:$0xf]
      %v292 = vld [vmem:[%s234 + $0x7c] sm:$0xf]
      %v293 = vld [vmem:[%s2] sm:$0xff]
      %v294 = vld [vmem:[%s2 + $0x8] sm:$0xff]
      %v295 = vld [vmem:[%s2 + $0x10] sm:$0xff]
      %v296 = vld [vmem:[%s2 + $0x18] sm:$0xff]
      %v297 = vld [vmem:[%s2 + $0x20] sm:$0xff]
      %v298 = vld [vmem:[%s2 + $0x28] sm:$0xff]
      %v299 = vld [vmem:[%s2 + $0x30] sm:$0xff]
      %v300 = vld [vmem:[%s2 + $0x38] sm:$0xff]
      %302 = vset.pattern.permute.xlu0 0
      %303 = vperm.xlu0 %302, %v293
      %v304 = vpop.permute.xlu0 %303
      %307 = vset.pattern.permute.xlu0 0
      %308 = vperm.xlu0 %307, %v294
      %v309 = vpop.permute.xlu0 %308
      %312 = vset.pattern.permute.xlu0 0
      %313 = vperm.xlu0 %312, %v295
      %v314 = vpop.permute.xlu0 %313
      %317 = vset.pattern.permute.xlu0 0
      %318 = vperm.xlu0 %317, %v296
      %v319 = vpop.permute.xlu0 %318
      %322 = vset.pattern.permute.xlu0 0
      %323 = vperm.xlu0 %322, %v297
      %v324 = vpop.permute.xlu0 %323
      %327 = vset.pattern.permute.xlu0 0
      %328 = vperm.xlu0 %327, %v298
      %v329 = vpop.permute.xlu0 %328
      %332 = vset.pattern.permute.xlu0 0
      %333 = vperm.xlu0 %332, %v299
      %v334 = vpop.permute.xlu0 %333
      %337 = vset.pattern.permute.xlu0 0
      %338 = vperm.xlu0 %337, %v300
      %v339 = vpop.permute.xlu0 %338
      %v349 = vunpack.c.l.b16 %v253
      %v350 = vunpack.c.h.b16 %v253
      %v351 = vunpack.c.l.b16 %v254
      %v352 = vunpack.c.h.b16 %v254
      %v353 = vunpack.c.l.b16 %v255
      %v354 = vunpack.c.h.b16 %v255
      %v355 = vunpack.c.l.b16 %v256
      %v356 = vunpack.c.h.b16 %v256
      %v357 = vunpack.c.l.b16 %v257
      %v358 = vunpack.c.h.b16 %v257
      %v359 = vunpack.c.l.b16 %v258
      %v360 = vunpack.c.h.b16 %v258
      %v361 = vunpack.c.l.b16 %v259
      %v362 = vunpack.c.h.b16 %v259
      %v363 = vunpack.c.l.b16 %v260
      %v364 = vunpack.c.h.b16 %v260
      %v365 = vpack.c.b16 %v351, %v349
      %v366 = vpack.c.b16 %v352, %v350
      %v367 = vpack.c.b16 %v355, %v353
      %v368 = vpack.c.b16 %v356, %v354
      %v369 = vpack.c.b16 %v359, %v357
      %v370 = vpack.c.b16 %v360, %v358
      %v371 = vpack.c.b16 %v363, %v361
      %v372 = vpack.c.b16 %v364, %v362
      %v413 = vunpack.c.l.b16 %v261
      %v414 = vunpack.c.l.b16 %v262
      %v415 = vunpack.c.l.b16 %v263
      %v416 = vunpack.c.l.b16 %v264
      %v417 = vunpack.c.l.b16 %v265
      %v418 = vunpack.c.l.b16 %v266
      %v419 = vunpack.c.l.b16 %v267
      %v420 = vunpack.c.l.b16 %v268
      %v421 = vunpack.c.l.b16 %v269
      %v422 = vunpack.c.l.b16 %v270
      %v423 = vunpack.c.l.b16 %v271
      %v424 = vunpack.c.l.b16 %v272
      %v425 = vunpack.c.l.b16 %v273
      %v426 = vunpack.c.l.b16 %v274
      %v427 = vunpack.c.l.b16 %v275
      %v428 = vunpack.c.l.b16 %v276
      %v429 = vunpack.c.l.b16 %v277
      %v430 = vunpack.c.l.b16 %v278
      %v431 = vunpack.c.l.b16 %v279
      %v432 = vunpack.c.l.b16 %v280
      %v433 = vunpack.c.l.b16 %v281
      %v434 = vunpack.c.l.b16 %v282
      %v435 = vunpack.c.l.b16 %v283
      %v436 = vunpack.c.l.b16 %v284
      %v437 = vunpack.c.l.b16 %v285
      %v438 = vunpack.c.l.b16 %v286
      %v439 = vunpack.c.l.b16 %v287
      %v440 = vunpack.c.l.b16 %v288
      %v441 = vunpack.c.l.b16 %v289
      %v442 = vunpack.c.l.b16 %v290
      %v443 = vunpack.c.l.b16 %v291
      %v444 = vunpack.c.l.b16 %v292
      %v445 = vpack.c.b16 %v414, %v413
      %v446 = vpack.c.b16 %v416, %v415
      %v447 = vpack.c.b16 %v418, %v417
      %v448 = vpack.c.b16 %v420, %v419
      %v449 = vpack.c.b16 %v422, %v421
      %v450 = vpack.c.b16 %v424, %v423
      %v451 = vpack.c.b16 %v426, %v425
      %v452 = vpack.c.b16 %v428, %v427
      %v453 = vpack.c.b16 %v430, %v429
      %v454 = vpack.c.b16 %v432, %v431
      %v455 = vpack.c.b16 %v434, %v433
      %v456 = vpack.c.b16 %v436, %v435
      %v457 = vpack.c.b16 %v438, %v437
      %v458 = vpack.c.b16 %v440, %v439
      %v459 = vpack.c.b16 %v442, %v441
      %v460 = vpack.c.b16 %v444, %v443
      %477 = vmatprep.subr.bf16.mxu0 0
      %478 = vmatpush1.bf16.msra.mxu0 %v445
      %479 = vmatprep.subr.bf16.mxu0 0
      %480 = vmatpush1.bf16.msra.mxu0 %v446
      %481 = vmatprep.subr.bf16.mxu0 0
      %482 = vmatpush1.bf16.msra.mxu0 %v447
      %483 = vmatprep.subr.bf16.mxu0 0
      %484 = vmatpush1.bf16.msra.mxu0 %v448
      %485 = vmatprep.subr.bf16.mxu0 0
      %486 = vmatpush1.bf16.msra.mxu0 %v449
      %487 = vmatprep.subr.bf16.mxu0 0
      %488 = vmatpush1.bf16.msra.mxu0 %v450
      %489 = vmatprep.subr.bf16.mxu0 0
      %490 = vmatpush1.bf16.msra.mxu0 %v451
      %491 = vmatprep.subr.bf16.mxu0 0
      %492 = vmatpush1.bf16.msra.mxu0 %v452
      %493 = vmatprep.subr.bf16.mxu0 0
      %494 = vmatpush1.bf16.msra.mxu0 %v453
      %495 = vmatprep.subr.bf16.mxu0 0
      %496 = vmatpush1.bf16.msra.mxu0 %v454
      %497 = vmatprep.subr.bf16.mxu0 0
      %498 = vmatpush1.bf16.msra.mxu0 %v455
      %499 = vmatprep.subr.bf16.mxu0 0
      %500 = vmatpush1.bf16.msra.mxu0 %v456
      %501 = vmatprep.subr.bf16.mxu0 0
      %502 = vmatpush1.bf16.msra.mxu0 %v457
      %503 = vmatprep.subr.bf16.mxu0 0
      %504 = vmatpush1.bf16.msra.mxu0 %v458
      %505 = vmatprep.subr.bf16.mxu0 0
      %506 = vmatpush1.bf16.msra.mxu0 %v459
      %507 = vmatprep.subr.bf16.mxu0 0
      %508 = vmatpush1.bf16.msra.mxu0 %v460
      %509 = vmatprep.mubr.bf16.mxu0 %v366
      %510 = vmatmul.mubr.bf16.gmra.mrb[0].mxu0 %v365
      %v511 = vpop.f32.mrb[0].mxu0
      %v512 = vadd.f32 %v304, %v511
      %v513 = vpop.f32.mrb[0].mxu0
      %v514 = vpop.f32.mrb[0].mxu0
      %v515 = vadd.f32 %v309, %v514
      %v516 = vpop.f32.mrb[0].mxu0
      %517 = vmatprep.mubr.bf16.mxu0 %v368
      %518 = vmatmul.mubr.bf16.gmra.mrb[0].mxu0 %v367
      %v519 = vpop.f32.mrb[0].mxu0
      %v520 = vadd.f32 %v314, %v519
      %v521 = vpop.f32.mrb[0].mxu0
      %v522 = vpop.f32.mrb[0].mxu0
      %v523 = vadd.f32 %v319, %v522
      %v524 = vpop.f32.mrb[0].mxu0
      %525 = vmatprep.mubr.bf16.mxu0 %v370
      %526 = vmatmul.mubr.bf16.gmra.mrb[0].mxu0 %v369
      %v527 = vpop.f32.mrb[0].mxu0
      %v528 = vadd.f32 %v324, %v527
      %v529 = vpop.f32.mrb[0].mxu0
      %v530 = vpop.f32.mrb[0].mxu0
      %v531 = vadd.f32 %v329, %v530
      %v532 = vpop.f32.mrb[0].mxu0
      %533 = vmatprep.mubr.bf16.mxu0 %v372
      %534 = vmatmul.mubr.bf16.gmra.mrb[0].mxu0 %v371
      %v535 = vpop.f32.mrb[0].mxu0
      %v536 = vadd.f32 %v334, %v535
      %v537 = vpop.f32.mrb[0].mxu0
      %v538 = vpop.f32.mrb[0].mxu0
      %v539 = vadd.f32 %v339, %v538
      %v540 = vpop.f32.mrb[0].mxu0
      %541 = vdwg.mxu0
      %vm542 = vcmask 64512
      %543 = vst.msk [vmem:[%s242] sm:$0xff] %vm542, %v512
      %544 = vst.msk [vmem:[%s242 + $0x8] sm:$0xff] %vm542, %v515
      %545 = vst.msk [vmem:[%s242 + $0x10] sm:$0xff] %vm542, %v520
      %546 = vst.msk [vmem:[%s242 + $0x18] sm:$0xff] %vm542, %v523
      %547 = vst.msk [vmem:[%s242 + $0x20] sm:$0xff] %vm542, %v528
      %548 = vst.msk [vmem:[%s242 + $0x28] sm:$0xff] %vm542, %v531
      %549 = vst.msk [vmem:[%s242 + $0x30] sm:$0xff] %vm542, %v536
      %550 = vst.msk [vmem:[%s242 + $0x38] sm:$0xff] %vm542, %v539
      %v551 = vsel %vm542, %v512, 0.0
      %552 = vadd.xlane.f32.xlu0 %v551
      %v553 = vpop.xlane.xlu0 %552
      %v554 = vsel %vm542, %v515, 0.0
      %555 = vadd.xlane.f32.xlu0 %v554
      %v556 = vpop.xlane.xlu0 %555
      %v557 = vsel %vm542, %v520, 0.0
      %558 = vadd.xlane.f32.xlu0 %v557
      %v559 = vpop.xlane.xlu0 %558
      %v560 = vsel %vm542, %v523, 0.0
      %561 = vadd.xlane.f32.xlu0 %v560
      %v562 = vpop.xlane.xlu0 %561
      %v563 = vsel %vm542, %v528, 0.0
      %564 = vadd.xlane.f32.xlu0 %v563
      %v565 = vpop.xlane.xlu0 %564
      %v566 = vsel %vm542, %v531, 0.0
      %567 = vadd.xlane.f32.xlu0 %v566
      %v568 = vpop.xlane.xlu0 %567
      %v569 = vsel %vm542, %v536, 0.0
      %570 = vadd.xlane.f32.xlu0 %v569
      %v571 = vpop.xlane.xlu0 %570
      %v572 = vsel %vm542, %v539, 0.0
      %573 = vadd.xlane.f32.xlu0 %v572
      %v574 = vpop.xlane.xlu0 %573
      %v575 = vmul.f32 %v512, %v512
      %v576 = vmul.f32 %v515, %v515
      %v577 = vmul.f32 %v520, %v520
      %v578 = vmul.f32 %v523, %v523
      %v579 = vmul.f32 %v528, %v528
      %v580 = vmul.f32 %v531, %v531
      %v581 = vmul.f32 %v536, %v536
      %v582 = vmul.f32 %v539, %v539
      %v583 = vsel %vm542, %v575, 0.0
      %584 = vadd.xlane.f32.xlu0 %v583
      %v585 = vpop.xlane.xlu0 %584
      %v586 = vsel %vm542, %v576, 0.0
      %587 = vadd.xlane.f32.xlu0 %v586
      %v588 = vpop.xlane.xlu0 %587
      %v589 = vsel %vm542, %v577, 0.0
      %590 = vadd.xlane.f32.xlu0 %v589
      %v591 = vpop.xlane.xlu0 %590
      %v592 = vsel %vm542, %v578, 0.0
      %593 = vadd.xlane.f32.xlu0 %v592
      %v594 = vpop.xlane.xlu0 %593
      %v595 = vsel %vm542, %v579, 0.0
      %596 = vadd.xlane.f32.xlu0 %v595
      %v597 = vpop.xlane.xlu0 %596
      %v598 = vsel %vm542, %v580, 0.0
      %599 = vadd.xlane.f32.xlu0 %v598
      %v600 = vpop.xlane.xlu0 %599
      %v601 = vsel %vm542, %v581, 0.0
      %602 = vadd.xlane.f32.xlu0 %v601
      %v603 = vpop.xlane.xlu0 %602
      %v604 = vsel %vm542, %v582, 0.0
      %605 = vadd.xlane.f32.xlu0 %v604
      %v606 = vpop.xlane.xlu0 %605
      %vm607 = vcmask 7168
      %v608 = vsel %vm607, %v553, %v585
      %v609 = vsel %vm607, %v556, %v588
      %v610 = vsel %vm607, %v559, %v591
      %v611 = vsel %vm607, %v562, %v594
      %v612 = vsel %vm607, %v565, %v597
      %v613 = vsel %vm607, %v568, %v600
      %v614 = vsel %vm607, %v571, %v603
      %v615 = vsel %vm607, %v574, %v606
      %vm616 = vcmask 15360
      %617 = vst.msk [vmem:[%s251] sm:$0xff] %vm616, %v608
      %618 = vst.msk [vmem:[%s251 + $0x8] sm:$0xff] %vm616, %v609
      %619 = vst.msk [vmem:[%s251 + $0x10] sm:$0xff] %vm616, %v610
      %620 = vst.msk [vmem:[%s251 + $0x18] sm:$0xff] %vm616, %v611
      %621 = vst.msk [vmem:[%s251 + $0x20] sm:$0xff] %vm616, %v612
      %622 = vst.msk [vmem:[%s251 + $0x28] sm:$0xff] %vm616, %v613
      %623 = vst.msk [vmem:[%s251 + $0x30] sm:$0xff] %vm616, %v614
      %624 = vst.msk [vmem:[%s251 + $0x38] sm:$0xff] %vm616, %v615
      %p625 = scmp.lt.s32.totalorder %s20, 1
      %s626 = scalar_select %p625, %s20, 1
      %p627 = scmp.lt.s32.totalorder %s21, 0
      %s628 = scalar_select %p627, %s21, 0
      %s629 = smul.addr %s626, 8
      %s630 = sadd.s32 %s628, %s629
      %s631 = smul.addr %s630, 8
      %s632 = scalar_lea.vmem %s3, %s631
      %p633 = scmp.lt.s32.totalorder %s20, 1
      %s634 = scalar_select %p633, %s20, 1
      %p635 = scmp.lt.s32.totalorder %s21, 0
      %s636 = scalar_select %p635, %s21, 0
      %s637 = smul.addr %s636, 8
      %s638 = smul.addr %s634, 8
      %s639 = sadd.s32 %s637, %s638
      %s640 = smul.addr %s639, 8
      %s641 = scalar_lea.vmem %s4, %s640
      // Predicated region
      $region33: #{tpu_custom_call.1} parent=31 // pred_check
        %p642 = pneg %p118
      $region34: #{tpu_custom_call.1} parent=31 // pred_check_branch
        %644 = sbr.rel (%p642) target = $region36
      $region35: #{tpu_custom_call.1} parent=31 // pred_region
        _
      $region36: #{tpu_custom_call.1} parent=31 // pred_fallthru
        _
      // Predicated region
      $region37: #{tpu_custom_call.1} parent=31 // pred_check
        %p645 = pneg %p146
      $region38: #{tpu_custom_call.1} parent=31 // pred_check_branch
        %647 = sbr.rel (%p645) target = $region40
      $region39: #{tpu_custom_call.1} parent=31 // pred_region
        _
      $region40: #{tpu_custom_call.1} parent=31 // pred_fallthru
        _
    $region32: #{tpu_custom_call.1} parent=5 // pred_fallthru
      _
    %p648 = scmp.le.s32.totalorder 2, %s11
    // Predicated region
    $region41: #{tpu_custom_call.1} parent=5 // pred_check
      %p649 = pneg %p648
    $region42: #{tpu_custom_call.1} parent=5 // pred_check_branch
      %651 = sbr.rel (%p649) target = $region44
    $region43: #{tpu_custom_call.1} parent=5 // pred_region
      %s652 = ssub.s32 %s11, 2
      // Predicated region
      $region45: #{tpu_custom_call.1} parent=43 // pred_check
        %p653 = pneg %p124
      $region46: #{tpu_custom_call.1} parent=43 // pred_check_branch
        %655 = sbr.rel (%p653) target = $region48
      $region47: #{tpu_custom_call.1} parent=43 // pred_region
        %p656 = scmp.lt.s32.totalorder %s22, 1
        %s657 = scalar_select %p656, %s22, 1
        %p658 = scmp.lt.s32.totalorder %s23, 0
        %s659 = scalar_select %p658, %s23, 0
        %s660 = smul.addr %s657, 8
        %s661 = sadd.s32 %s659, %s660
        %s662 = smul.addr %s661, 8
        %s663 = scalar_lea.vmem %s3, %s662
      $region48: #{tpu_custom_call.1} parent=43 // pred_fallthru
        _
      // Predicated region
      $region49: #{tpu_custom_call.1} parent=43 // pred_check
        %p664 = pneg %p152
      $region50: #{tpu_custom_call.1} parent=43 // pred_check_branch
        %666 = sbr.rel (%p664) target = $region52
      $region51: #{tpu_custom_call.1} parent=43 // pred_region
        %p667 = scmp.lt.s32.totalorder %s22, 1
        %s668 = scalar_select %p667, %s22, 1
        %p669 = scmp.lt.s32.totalorder %s23, 0
        %s670 = scalar_select %p669, %s23, 0
        %s671 = smul.addr %s670, 8
        %s672 = smul.addr %s668, 8
        %s673 = sadd.s32 %s671, %s672
        %s674 = smul.addr %s673, 8
        %s675 = scalar_lea.vmem %s4, %s674
      $region52: #{tpu_custom_call.1} parent=43 // pred_fallthru
        _
    $region44: #{tpu_custom_call.1} parent=5 // pred_fallthru
      _
  $region6: #{tpu_custom_call.1} parent=0 // loop_footer
    %s15 = sadd.s32 1, %s11
  $region7: #{tpu_custom_call.1} parent=0 // loop_footer_branch
    %10 = sbr.rel target = $region3
  $region8: #{tpu_custom_call.1} parent=0 // loop_exit
    _

</llo_original>
